<compile_context>
chip_gen: v6e
topology: v6e:2x2x1
jax: 0.10.0
libtpu: 0.0.40
codegen_flags: <defaults>
</compile_context>

<pallas_src>
import math
from functools import partial

import numpy as np
import jax
import jax.numpy as jnp
from jax import lax
from jax.experimental import pallas as pl
from jax.experimental.pallas import tpu as pltpu


def _gaussian_weights_1d(kernel_size: int, sigma: float) -> np.ndarray:
    """1-D normalized Gaussian taps; outer(w, w) equals the module's 2-D kernel."""
    mean = (kernel_size - 1) / 2.0
    xs = np.arange(kernel_size, dtype=np.float64)
    g = np.exp(-(((xs - mean) / sigma) ** 2) / 2.0) / (sigma * math.sqrt(2.0 * math.pi))
    g = g / g.sum()
    return g.astype(np.float32)


def _shift2d(a, dr: int, dc: int):
    """b[i, j] = a[i + dr, j + dc] if the source index is in range, else 0.

    dr/dc are compile-time Python ints.  Row shifts are sublane slices,
    column shifts are lane slices; zero fill realizes the 'same' padding.
    """
    H, W = a.shape
    if dr > 0:
        a = jnp.concatenate([a[dr:, :], jnp.zeros((dr, W), a.dtype)], axis=0)
    elif dr < 0:
        a = jnp.concatenate([jnp.zeros((-dr, W), a.dtype), a[: H + dr, :]], axis=0)
    if dc > 0:
        a = jnp.concatenate([a[:, dc:], jnp.zeros((H, dc), a.dtype)], axis=1)
    elif dc < 0:
        a = jnp.concatenate([jnp.zeros((H, -dc), a.dtype), a[:, : W + dc]], axis=1)
    return a


def _smooth_kernel(x_ref, o_ref, *, w1d, pad):
    """Separable depthwise Gaussian blur for one (1, H, W) channel plane.

    x_ref / o_ref : (1, H, W) blocks in VMEM; H on sublanes, W on lanes.
    No scratch: the horizontal-pass intermediate stays in registers /
    compiler-managed VMEM temporaries; only in+out blocks are pipelined.
    """
    x = x_ref[0].astype(jnp.float32)                       # (H, W)

    # Horizontal pass: lane-axis taps, symmetric taps paired (1 mul per pair).
    h = w1d[pad] * x
    for s in range(1, pad + 1):
        h = h + w1d[pad - s] * (_shift2d(x, 0, -s) + _shift2d(x, 0, s))

    # Vertical pass: sublane-axis taps on the register-held intermediate.
    out = w1d[pad] * h
    for s in range(1, pad + 1):
        out = out + w1d[pad - s] * (_shift2d(h, -s, 0) + _shift2d(h, s, 0))

    o_ref[0] = out.astype(o_ref.dtype)


def _vmem_limit_bytes(per_step_bytes: int) -> int:
    """Size the scoped-VMEM limit from the footprint and the chip's capacity."""
    cap = 64 * 1024 * 1024  # conservative default (v7x per-TC VMEM)
    try:
        info = pltpu.get_tpu_info()
        cap = int(getattr(info, "vmem_capacity_bytes", cap))
    except Exception:
        pass
    want = max(32 * 1024 * 1024, 2 * per_step_bytes)
    return int(min(want, int(0.7 * cap)))


def gaussian_smoothing(x: jnp.ndarray, kernel_size: int, sigma: float) -> jnp.ndarray:
    """Equivalent of GaussianSmoothing(C, kernel_size, sigma)(x); x is NCHW."""
    assert kernel_size % 2 == 1, "odd kernel_size required for symmetric 'same' padding"
    N, C, H, W = x.shape
    K = kernel_size
    pad = (K - 1) // 2

    w1d = tuple(float(v) for v in _gaussian_weights_1d(K, sigma))

    # Depthwise conv => every (n, c) plane is independent: flatten to the grid.
    xf = x.reshape(N * C, H, W)
    itemsize = x.dtype.itemsize

    # Per-step resident set: double-buffered in/out blocks + f32 temporaries
    # (x, h, out and a couple of shifted taps).
    plane_f32 = H * W * 4
    per_step = 4 * H * W * itemsize + 6 * plane_f32
    vmem_limit = _vmem_limit_bytes(per_step)

    cost = pl.CostEstimate(
        flops=2 * (K + pad + 1) * N * C * H * W,   # adds + paired muls, both passes
        transcendentals=0,
        bytes_accessed=2 * N * C * H * W * itemsize,
    )

    out = pl.pallas_call(
        partial(_smooth_kernel, w1d=w1d, pad=pad),
        out_shape=jax.ShapeDtypeStruct((N * C, H, W), x.dtype),
        grid=(N * C,),
        in_specs=[pl.BlockSpec((1, H, W), lambda b: (b, 0, 0))],
        out_specs=pl.BlockSpec((1, H, W), lambda b: (b, 0, 0)),
        compiler_params=pltpu.CompilerParams(
            dimension_semantics=("parallel",),
            vmem_limit_bytes=vmem_limit,
        ),
        cost_estimate=cost,
    )(xf)

    # TODO(synk): for the degenerate N*C == 1 case with very large H*W, add an
    # H-tile grid axis with a (K-1)-row halo (manual make_async_copy) so both
    # v7x TensorCores get work and the per-step footprint stays bounded.
    return out.reshape(N, C, H, W)


def _reference(x, kernel_size, sigma):
    """Pure-JAX depthwise conv (mirrors F.conv2d(weight, groups=C, padding='same'))."""
    C = x.shape[1]
    w1d = _gaussian_weights_1d(kernel_size, sigma)
    w2d = jnp.asarray(np.outer(w1d, w1d), dtype=jnp.float32)
    w_dw = jnp.broadcast_to(w2d[None, None], (C, 1, kernel_size, kernel_size))
    return lax.conv_general_dilated(
        x.astype(jnp.float32), w_dw,
        window_strides=(1, 1), padding="SAME",
        dimension_numbers=("NCHW", "OIHW", "NCHW"),
        feature_group_count=C,
    )


if __name__ == "__main__":
    key = jax.random.PRNGKey(0)
    N, C, H, W = 2, 4, 16, 16
    x = jax.random.normal(key, (N, C, H, W), dtype=jnp.float32)

    # K = 3 (pad = 1)
    out = jax.block_until_ready(gaussian_smoothing(x, 3, 1.0))
    ref = jax.block_until_ready(_reference(x, 3, 1.0))
    assert out.shape == (N, C, H, W)
    assert jnp.allclose(out, ref.astype(out.dtype), atol=1e-4, rtol=1e-4), \
        "mismatch vs reference depthwise conv (K=3)"

    # K = 5 (pad = 2) exercises the paired symmetric taps with multi-lane shifts.
    out5 = jax.block_until_ready(gaussian_smoothing(x, 5, 2.0))
    ref5 = jax.block_until_ready(_reference(x, 5, 2.0))
    assert jnp.allclose(out5, ref5.astype(out5.dtype), atol=1e-4, rtol=1e-4), \
        "mismatch vs reference depthwise conv (K=5)"

    print("KERNEL_OK")
</pallas_src>

<mosaic_0001>
module attributes {stable_mosaic.version = 11 : i64} {
  func.func @_smooth_kernel(%arg0: i32, %arg1: memref<1x16x16xf32, #tpu.memory_space<vmem>>, %arg2: memref<1x16x16xf32, #tpu.memory_space<vmem>>) attributes {dimension_semantics = [#tpu.dimension_semantics<parallel>], iteration_bounds = array<i64: 8>, scalar_prefetch = 0 : i64, scratch_operands = 0 : i64, tpu.core_type = #tpu.core_type<tc>, window_params = [{transform_indices = @transform_0, window_bounds = array<i64: 1, 16, 16>}, {transform_indices = @transform_1, window_bounds = array<i64: 1, 16, 16>}]} {
    %c0 = arith.constant 0 : index
    %c0_0 = arith.constant 0 : index
    %c0_1 = arith.constant 0 : index
    %0 = vector.load %arg1[%c0, %c0_0, %c0_1] : memref<1x16x16xf32, #tpu.memory_space<vmem>>, vector<1x16x16xf32>
    %1 = vector.shape_cast %0 : vector<1x16x16xf32> to vector<16x16xf32>
    %cst = arith.constant 0.451862752 : f32
    %2 = vector.broadcast %cst : f32 to vector<16x16xf32>
    %3 = arith.mulf %2, %1 : vector<16x16xf32>
    %cst_2 = arith.constant 0.000000e+00 : f32
    %4 = vector.broadcast %cst_2 : f32 to vector<16x1xf32>
    %5 = vector.extract_strided_slice %1 {offsets = [0, 0], sizes = [16, 15], strides = [1, 1]} : vector<16x16xf32> to vector<16x15xf32>
    %6 = tpu.concatenate %4, %5 in 1 : vector<16x1xf32>, vector<16x15xf32> -> vector<16x16xf32>
    %7 = vector.extract_strided_slice %1 {offsets = [0, 1], sizes = [16, 15], strides = [1, 1]} : vector<16x16xf32> to vector<16x15xf32>
    %cst_3 = arith.constant 0.000000e+00 : f32
    %8 = vector.broadcast %cst_3 : f32 to vector<16x1xf32>
    %9 = tpu.concatenate %7, %8 in 1 : vector<16x15xf32>, vector<16x1xf32> -> vector<16x16xf32>
    %10 = arith.addf %6, %9 : vector<16x16xf32>
    %cst_4 = arith.constant 0.274068624 : f32
    %11 = vector.broadcast %cst_4 : f32 to vector<16x16xf32>
    %12 = arith.mulf %11, %10 : vector<16x16xf32>
    %13 = arith.addf %3, %12 : vector<16x16xf32>
    %cst_5 = arith.constant 0.451862752 : f32
    %14 = vector.broadcast %cst_5 : f32 to vector<16x16xf32>
    %15 = arith.mulf %14, %13 : vector<16x16xf32>
    %cst_6 = arith.constant 0.000000e+00 : f32
    %16 = vector.broadcast %cst_6 : f32 to vector<1x16xf32>
    %17 = vector.extract_strided_slice %13 {offsets = [0, 0], sizes = [15, 16], strides = [1, 1]} : vector<16x16xf32> to vector<15x16xf32>
    %18 = tpu.concatenate %16, %17 in 0 : vector<1x16xf32>, vector<15x16xf32> -> vector<16x16xf32>
    %19 = vector.extract_strided_slice %13 {offsets = [1, 0], sizes = [15, 16], strides = [1, 1]} : vector<16x16xf32> to vector<15x16xf32>
    %cst_7 = arith.constant 0.000000e+00 : f32
    %20 = vector.broadcast %cst_7 : f32 to vector<1x16xf32>
    %21 = tpu.concatenate %19, %20 in 0 : vector<15x16xf32>, vector<1x16xf32> -> vector<16x16xf32>
    %22 = arith.addf %18, %21 : vector<16x16xf32>
    %cst_8 = arith.constant 0.274068624 : f32
    %23 = vector.broadcast %cst_8 : f32 to vector<16x16xf32>
    %24 = arith.mulf %23, %22 : vector<16x16xf32>
    %25 = arith.addf %15, %24 : vector<16x16xf32>
    %c0_9 = arith.constant 0 : index
    %c0_10 = arith.constant 0 : index
    %c0_11 = arith.constant 0 : index
    %26 = vector.load %arg2[%c0_9, %c0_10, %c0_11] : memref<1x16x16xf32, #tpu.memory_space<vmem>>, vector<1x16x16xf32>
    %27 = vector.shape_cast %26 : vector<1x16x16xf32> to vector<16x16xf32>
    %28 = vector.shape_cast %25 : vector<16x16xf32> to vector<1x16x16xf32>
    tpu.vector_store %arg2[%c0_9, %c0_10, %c0_11], %28 {strides = array<i32>} : memref<1x16x16xf32, #tpu.memory_space<vmem>>, vector<1x16x16xf32>,
    return
  }
  func.func @transform_0(%arg0: i32) -> (i32, i32, i32) {
    %c0_i32 = arith.constant 0 : i32
    %c0_i32_0 = arith.constant 0 : i32
    %c0_i32_1 = arith.constant 0 : i32
    return %arg0, %c0_i32, %c0_i32_0 : i32, i32, i32
  }
  func.func @transform_1(%arg0: i32) -> (i32, i32, i32) {
    %c0_i32 = arith.constant 0 : i32
    %c0_i32_0 = arith.constant 0 : i32
    %c0_i32_1 = arith.constant 0 : i32
    return %arg0, %c0_i32, %c0_i32_0 : i32, i32, i32
  }
}

</mosaic_0001>

<llo_original>
// kernel: tpu_custom_call.1
$region0: #{tpu_custom_call.1}
  #allocation0 [shape = 'u32[]', space=smem, size = 0x4, offset = 0x4, fixed_abs, tag = 'smem constant byte address 0x4 - core index']
  #allocation1 [shape = 'u32[144,128]{1,0:T(1,128)}', space=vmem, size = 0x12000, scoped, tag = 'internal scratch']
  %s0 = inlined_call_operand.hbm [shape: f32[8,16,16], index: 0, kind: input, shape index: {}]
  %s1 = inlined_call_operand.hbm [shape: f32[8,16,16], index: 1, kind: output, shape index: {}]
  %s2 = sld [smem:[#allocation0]]
  $region41: #{tpu_custom_call.1} parent=0
    _
  %s4 = ssub.s32 1, %s2
  %s5 = scalar_select 0, %s4, %s2
  $region1: #{tpu_custom_call.1} parent=0
    #allocation2 [shape = 'u8[16384]{0}', space=vmem, size = 0x4000, scoped, tag = 'input window, operand 0']
    #allocation3 [shape = 's32[2]{0}', space=sflag, size = 0x8, scoped, tag = 'scoped memory for tpu_custom_call.1']
    #allocation4 [shape = 's32[2]{0}', space=sflag, size = 0x8, scoped, tag = 'scoped memory for tpu_custom_call.1']
    #allocation5 [shape = 'u8[16384]{0}', space=vmem, size = 0x4000, scoped, tag = 'output window, operand 0']
    %6 = vsyncpa [#allocation3], 0
    %s7 = scalar_lea.sflag [#allocation3], 1
    %8 = vsyncpa %s7, 0
    %9 = vsyncpa [#allocation4], 0
    %s10 = scalar_lea.sflag [#allocation4], 1
    %11 = vsyncpa %s10, 0
    loop: start=0, step=1, limit=10
    $region2: #{tpu_custom_call.1} parent=1 // loop_pre_header
      _
    $region3: #{tpu_custom_call.1} parent=1 // loop_header
      %s13 = sphi 0, %s17
      %p14 = scmp.ge.s32.totalorder %s13, 10
      %s23 = sphi 0, %s25
      %s26 = sphi 0, %s23
      %s27 = sphi 0, %s26
      %s43 = sphi 0, %s27
      %s49 = sphi 0, %s51
      %s52 = sphi 0, %s49
      %s53 = sphi 0, %s52
      %s69 = sphi 0, %s53
    $region4: #{tpu_custom_call.1} parent=1 // loop_header_branch
      %16 = sbr.rel (%p14) target = $region8
    $region5: #{tpu_custom_call.1} parent=1 // loop_body
      %s18 = ssub.s32 %s13, 1
      %s19 = ssub.s32 %s13, 2
      %s20 = sadd.s32 %s13, 1
      %s21 = ssub.s32 %s13, %s20
      %p22 = scmp.eq.s32.totalorder %s21, 0
      %s24 = sadd.s32 %s23, 1
      %s25 = scalar_select %p22, %s23, %s24
      %p28 = pneg %p22
      %p29 = scmp.eq.s32.totalorder %s13, 7
      %p30 = por %p28, %p29
      %p31 = scmp.ne.s32.totalorder %s23, %s26
      %p32 = scmp.eq.s32.totalorder %s13, 0
      %p33 = por %p31, %p32
      %p34 = scmp.ne.s32.totalorder %s23, %s26
      %p35 = scmp.eq.s32.totalorder %s18, 7
      %p36 = por %p34, %p35
      %p37 = scmp.ne.s32.totalorder %s26, %s27
      %p38 = scmp.eq.s32.totalorder %s18, 0
      %p39 = por %p37, %p38
      %p40 = scmp.ne.s32.totalorder %s26, %s27
      %p41 = scmp.eq.s32.totalorder %s19, 7
      %p42 = por %p40, %p41
      %p44 = scmp.ne.s32.totalorder %s27, %s43
      %p45 = scmp.eq.s32.totalorder %s19, 0
      %p46 = por %p44, %p45
      %s47 = ssub.s32 %s13, %s20
      %p48 = scmp.eq.s32.totalorder %s47, 0
      %s50 = sadd.s32 %s49, 1
      %s51 = scalar_select %p48, %s49, %s50
      %p54 = pneg %p48
      %p55 = scmp.eq.s32.totalorder %s13, 7
      %p56 = por %p54, %p55
      %p57 = scmp.ne.s32.totalorder %s49, %s52
      %p58 = scmp.eq.s32.totalorder %s13, 0
      %p59 = por %p57, %p58
      %p60 = scmp.ne.s32.totalorder %s49, %s52
      %p61 = scmp.eq.s32.totalorder %s18, 7
      %p62 = por %p60, %p61
      %p63 = scmp.ne.s32.totalorder %s52, %s53
      %p64 = scmp.eq.s32.totalorder %s18, 0
      %p65 = por %p63, %p64
      %p66 = scmp.ne.s32.totalorder %s52, %s53
      %p67 = scmp.eq.s32.totalorder %s19, 7
      %p68 = por %p66, %p67
      %p70 = scmp.ne.s32.totalorder %s53, %s69
      %p71 = scmp.eq.s32.totalorder %s19, 0
      %p72 = por %p70, %p71
      %p73 = scmp.le.s32.totalorder 1, %s13
      %p74 = scmp.lt.s32.totalorder %s13, 9
      %p75 = pnand %p73, %p74
      %p76 = pneg %p75
      // Predicated region
      $region9: #{tpu_custom_call.1} parent=5 // pred_check
        _
      $region10: #{tpu_custom_call.1} parent=5 // pred_check_branch
        %78 = sbr.rel (%p75) target = $region12
      $region11: #{tpu_custom_call.1} parent=5 // pred_region
        %s79 = ssub.s32 %s13, 1
      $region12: #{tpu_custom_call.1} parent=5 // pred_fallthru
        _
      %p80 = scmp.lt.s32.totalorder %s13, 8
      // Predicated region
      $region13: #{tpu_custom_call.1} parent=5 // pred_check
        %p81 = pneg %p80
      $region14: #{tpu_custom_call.1} parent=5 // pred_check_branch
        %83 = sbr.rel (%p81) target = $region16
      $region15: #{tpu_custom_call.1} parent=5 // pred_region
        // Predicated region
        $region17: #{tpu_custom_call.1} parent=15 // pred_check
          %p84 = pneg %p33
        $region18: #{tpu_custom_call.1} parent=15 // pred_check_branch
          %86 = sbr.rel (%p84) target = $region20
        $region19: #{tpu_custom_call.1} parent=15 // pred_region
          %s87 = sand.u32 %s23, 1
          %s88 = scalar_lea.sflag [#allocation3], %s87
          %s89 = sand.u32 %s23, 1
          %s90 = smul.addr %s89, 16
          %s91 = scalar_lea.vmem [#allocation2], %s90
          %s93 = ssub.s32 256, 256
          %94 = vsyncadd %s88, %s93
          %s95 = smul.addr %s13, 2
          %s96 = smul.addr %s95, 128
          %s97 = scalar_lea.hbm %s0, %s96
          %s98 = sshll.u32 %s91, 4
          %s99 = int_to_ptr.vmem [resolvable:$true] %s98
          %104 = dma.hbm_to_vmem [thread:$0]  %s97, 256, %s99, %s88, 128, 128, 8
        $region20: #{tpu_custom_call.1} parent=15 // pred_fallthru
          _
      $region16: #{tpu_custom_call.1} parent=5 // pred_fallthru
        _
      %p105 = scmp.le.s32.totalorder 1, %s13
      %p106 = scmp.lt.s32.totalorder %s13, 9
      %p107 = pnand %p105, %p106
      %p108 = pneg %p107
      // Predicated region
      $region21: #{tpu_custom_call.1} parent=5 // pred_check
        _
      $region22: #{tpu_custom_call.1} parent=5 // pred_check_branch
        %110 = sbr.rel (%p107) target = $region24
      $region23: #{tpu_custom_call.1} parent=5 // pred_region
        %s111 = ssub.s32 %s13, 1
        %s112 = sand.u32 %s26, 1
        %s113 = scalar_lea.sflag [#allocation3], %s112
        %s114 = sand.u32 %s26, 1
        %s115 = smul.addr %s114, 16
        %s116 = scalar_lea.vmem [#allocation2], %s115
        // Predicated region
        $region25: #{tpu_custom_call.1} parent=23 // pred_check
          %p117 = pneg %p39
        $region26: #{tpu_custom_call.1} parent=23 // pred_check_branch
          %119 = sbr.rel (%p117) target = $region28
        $region27: #{tpu_custom_call.1} parent=23 // pred_region
          %120 = dma.done %s113, 256
        $region28: #{tpu_custom_call.1} parent=23 // pred_fallthru
          _
        %s121 = sand.u32 %s26, 1
        %s122 = scalar_lea.sflag [#allocation3], %s121
        %s123 = sand.u32 %s26, 1
        %s124 = smul.addr %s123, 16
        %s125 = scalar_lea.vmem [#allocation2], %s124
        %p126 = pneg %p39
        %p127 = pneg %p36
        %p128 = pneg %p65
        %p129 = pneg %p62
        %s130 = sand.u32 %s52, 1
        %s131 = scalar_lea.sflag [#allocation4], %s130
        %s132 = sand.u32 %s52, 1
        %s133 = smul.addr %s132, 16
        %s134 = scalar_lea.vmem [#allocation5], %s133
        %v135 = vld [vmem:[%s116] sm:$0xff]
        %v136 = vld [vmem:[%s116 + $0x8] sm:$0xff]
        %v137 = vmul.f32 %v135, 0.45186275
        %v138 = vmul.f32 %v136, 0.45186275
        %141 = vrot.lane.b32.xlu0 %v135, 1
        %v142 = vpop.permute.xlu0 %141
        %143 = vrot.lane.b32.xlu0 %v136, 1
        %v144 = vpop.permute.xlu0 %143
        %vm147 = vcmask 7168
        %v148 = vsel %vm147, 0.0, %v142
        %v149 = vsel %vm147, 0.0, %v144
        %150 = vrot.lane.b32.xlu0 %v135, 127
        %v151 = vpop.permute.xlu0 %150
        %152 = vrot.lane.b32.xlu0 %v136, 127
        %v153 = vpop.permute.xlu0 %152
        %vm156 = vcmask 121856
        %v157 = vsel %vm156, %v151, 0.0
        %v158 = vsel %vm156, %v153, 0.0
        %v159 = vadd.f32 %v148, %v157
        %v160 = vadd.f32 %v149, %v158
        %v161 = vmul.f32 %v159, 0.27406862
        %v162 = vmul.f32 %v160, 0.27406862
        %v163 = vadd.f32 %v137, %v161
        %v164 = vadd.f32 %v138, %v162
        %v165 = vmul.f32 %v163, 0.45186275
        %v166 = vmul.f32 %v164, 0.45186275
        %vm169 = vcmask 1040384
        %v170 = vrot.slane %v163, 7
        %v171 = vrot.slane %v164, 7
        %v172 = vsel %vm169, %v170, %v171
        %v175 = vsel %vm169, 0.0, %v170
        %vm176 = vcmask 1046528
        %v177 = vrot.slane %v163, 1
        %v178 = vrot.slane %v164, 1
        %v179 = vsel %vm176, %v177, %v178
        %v182 = vsel %vm176, %v178, 0.0
        %v183 = vadd.f32 %v175, %v179
        %v184 = vadd.f32 %v172, %v182
        %v185 = vmul.f32 %v183, 0.27406862
        %v186 = vmul.f32 %v184, 0.27406862
        %v187 = vadd.f32 %v165, %v185
        %v188 = vadd.f32 %v166, %v186
        %vm189 = vcmask 130048
        %190 = vst.msk [vmem:[%s134] sm:$0xff] %vm189, %v187
        %191 = vst.msk [vmem:[%s134 + $0x8] sm:$0xff] %vm189, %v188
        %s192 = sand.u32 %s52, 1
        %s193 = scalar_lea.sflag [#allocation4], %s192
        %s194 = sand.u32 %s52, 1
        %s195 = smul.addr %s194, 16
        %s196 = scalar_lea.vmem [#allocation5], %s195
        // Predicated region
        $region29: #{tpu_custom_call.1} parent=23 // pred_check
          %p197 = pneg %p62
        $region30: #{tpu_custom_call.1} parent=23 // pred_check_branch
          %199 = sbr.rel (%p197) target = $region32
        $region31: #{tpu_custom_call.1} parent=23 // pred_region
          %s201 = ssub.s32 256, 256
          %202 = vsyncadd %s193, %s201
          %s203 = smul.addr %s18, 2
          %s204 = smul.addr %s203, 128
          %s205 = scalar_lea.hbm %s1, %s204
          %s206 = sshll.u32 %s196, 4
          %s207 = int_to_ptr.vmem [resolvable:$true] %s206
          %212 = dma.vmem_to_hbm [thread:$0]  %s207, 256, %s205, %s193, 128, 128, 8
        $region32: #{tpu_custom_call.1} parent=23 // pred_fallthru
          _
      $region24: #{tpu_custom_call.1} parent=5 // pred_fallthru
        _
      %p213 = scmp.le.s32.totalorder 2, %s13
      // Predicated region
      $region33: #{tpu_custom_call.1} parent=5 // pred_check
        %p214 = pneg %p213
      $region34: #{tpu_custom_call.1} parent=5 // pred_check_branch
        %216 = sbr.rel (%p214) target = $region36
      $region35: #{tpu_custom_call.1} parent=5 // pred_region
        %s217 = ssub.s32 %s13, 2
        // Predicated region
        $region37: #{tpu_custom_call.1} parent=35 // pred_check
          %p218 = pneg %p68
        $region38: #{tpu_custom_call.1} parent=35 // pred_check_branch
          %220 = sbr.rel (%p218) target = $region40
        $region39: #{tpu_custom_call.1} parent=35 // pred_region
          %s221 = sand.u32 %s53, 1
          %s222 = scalar_lea.sflag [#allocation4], %s221
          %s223 = sand.u32 %s53, 1
          %s224 = smul.addr %s223, 16
          %s225 = scalar_lea.vmem [#allocation5], %s224
          %226 = dma.done %s222, 256
        $region40: #{tpu_custom_call.1} parent=35 // pred_fallthru
          _
      $region36: #{tpu_custom_call.1} parent=5 // pred_fallthru
        _
    $region6: #{tpu_custom_call.1} parent=1 // loop_footer
      %s17 = sadd.s32 1, %s13
    $region7: #{tpu_custom_call.1} parent=1 // loop_footer_branch
      %12 = sbr.rel target = $region3
    $region8: #{tpu_custom_call.1} parent=1 // loop_exit
      _
    %227 = vsyncpa [#allocation3], 1
    %s228 = scalar_lea.sflag [#allocation3], 1
    %229 = vsyncpa %s228, 1
    %230 = vsyncpa [#allocation4], 1
    %s231 = scalar_lea.sflag [#allocation4], 1
    %232 = vsyncpa %s231, 1

</llo_original>
